<compile_context>
chip_gen: v7x
topology: tpu7x:2x2x1
jax: 0.10.0
libtpu: 0.0.40
codegen_flags: <defaults>
</compile_context>

<pallas_src>
import functools
import math

import jax
import jax.numpy as jnp
from jax.experimental import pallas as pl
from jax.experimental.pallas import tpu as pltpu


# ----------------------------------------------------------------------------
# Pallas kernel: one lane-dense (C_out, batch_tile*T_out) output slab per step
# ----------------------------------------------------------------------------
def _skeleton_conv_kernel(x_ref, w_ref, b_ref, o_ref, *,
                          batch_tile, k_size, t_out, stride):
    # x_ref: (batch_tile, C_in, T_pad)   compute dtype (bf16)
    # w_ref: (C_out, K*C_in)             premasked + K-folded, compute dtype
    # b_ref: (C_out, 1)                  f32
    # o_ref: (C_out, batch_tile*T_out)   output dtype
    cols = []
    for b in range(batch_tile):          # static, small -> unrolled
        taps = []
        for k in range(k_size):          # static -> unrolled
            if stride == 1:
                taps.append(x_ref[b, :, pl.ds(k, t_out)])
            else:
                taps.append(x_ref[b, :, pl.ds(k, t_out, stride=stride)])
        cols.append(jnp.concatenate(taps, axis=0))          # (K*C_in, T_out)
    xcol = cols[0] if batch_tile == 1 else jnp.concatenate(cols, axis=1)
    # Single deep MXU contraction over K*C_in, f32 accumulation.
    acc = jnp.dot(w_ref[...], xcol, preferred_element_type=jnp.float32)
    o_ref[...] = (acc + b_ref[...]).astype(o_ref.dtype)


# ----------------------------------------------------------------------------
# Batch-tile picker: fold batch into lanes, keep blocks (8,128)-friendly
# ----------------------------------------------------------------------------
def _pick_batch_tile(n, t_out, max_lanes=2048):
    # Prefer a divisor of n whose lane footprint (bt*t_out) is a multiple of
    # 128 (lane-dense, tileable) and bounded; prefer >=2 grid steps (megacore).
    qual = [bt for bt in range(1, n + 1)
            if n % bt == 0 and (bt * t_out) % 128 == 0
            and bt * t_out <= max_lanes]
    if not qual:
        return n                      # single grid step; block == full array
    multi = [bt for bt in qual if n // bt >= 2]
    return max(multi) if multi else max(qual)


# ----------------------------------------------------------------------------
# Wrapper
# ----------------------------------------------------------------------------
def skeleton_conv_forward(x, weight, mask, bias, *, stride=1, padding=0,
                          padding_mode="constant",
                          compute_dtype=jnp.bfloat16, batch_tile=None):
    n, c_in, t = x.shape
    c_out, c_in_w, k_size = weight.shape
    assert c_in_w == c_in
    t_pad = t + 2 * padding
    t_out = (t_pad - k_size) // stride + 1
    assert t_out >= 1

    if bias is None:
        bias = jnp.zeros((c_out,), jnp.float32)

    # Premask + fold K into the contraction dim once (grid-invariant work).
    # W2[co, k*C_in + ci] = (W*M)[co, ci, k]
    w2 = (weight * mask).transpose(0, 2, 1).reshape(c_out, k_size * c_in)
    w2 = w2.astype(compute_dtype)
    b2 = bias.astype(jnp.float32).reshape(c_out, 1)

    # Padding in the wrapper ('zeros' -> constant, 'reflection' -> reflect).
    # TODO(synk): at production T, replace this extra HBM copy of x with
    # in-kernel boundary-tap masking on the first/last time tile.
    x_pad = jnp.pad(x, ((0, 0), (0, 0), (padding, padding)),
                    mode=padding_mode).astype(compute_dtype)

    if batch_tile is None:
        batch_tile = _pick_batch_tile(n, t_out)
    assert n % batch_tile == 0
    grid = (n // batch_tile,)

    kernel = functools.partial(
        _skeleton_conv_kernel, batch_tile=batch_tile,
        k_size=k_size, t_out=t_out, stride=stride)

    # TODO(synk): for production channel counts / long T, add C_out and T_out
    # grid axes (with a (K-1)*stride halo) and set vmem_limit_bytes explicitly
    # (v7x has only 64 MiB VMEM). Whole-array blocks are fine at these shapes.
    y2 = pl.pallas_call(
        kernel,
        out_shape=jax.ShapeDtypeStruct((c_out, n * t_out), x.dtype),
        grid_spec=pltpu.PrefetchScalarGridSpec(
            num_scalar_prefetch=0,
            grid=grid,
            in_specs=[
                pl.BlockSpec((batch_tile, c_in, t_pad), lambda i: (i, 0, 0)),
                pl.BlockSpec((c_out, k_size * c_in), lambda i: (0, 0)),
                pl.BlockSpec((c_out, 1), lambda i: (0, 0)),
            ],
            out_specs=pl.BlockSpec((c_out, batch_tile * t_out),
                                   lambda i: (0, i)),
        ),
        compiler_params=pltpu.CompilerParams(
            dimension_semantics=("parallel",)),
    )(x_pad, w2, b2)

    # (C_out, N*T_out) -> (N, C_out, T_out)
    return y2.reshape(c_out, n, t_out).transpose(1, 0, 2)


# ----------------------------------------------------------------------------
# Deterministic parameter construction (mirrors SkeletonConv.__init__ shapes)
# ----------------------------------------------------------------------------
def build_skeleton_conv_params(key, neighbour_list, in_channels, out_channels,
                               kernel_size, joint_num):
    in_cpj = in_channels // joint_num
    out_cpj = out_channels // joint_num
    assert in_channels % joint_num == 0 and out_channels % joint_num == 0

    # expanded neighbour list -> topology mask
    mask = jnp.zeros((out_channels, in_channels, kernel_size), jnp.float32)
    for i, neighbour in enumerate(neighbour_list):
        expanded = []
        for k in neighbour:
            for j in range(in_cpj):
                expanded.append(k * in_cpj + j)
        idx = jnp.asarray(expanded, jnp.int32)
        mask = mask.at[out_cpj * i:out_cpj * (i + 1), idx, :].set(1.0)

    # kaiming-uniform-like deterministic init (synthetic; masked in forward)
    kw, kb = jax.random.split(key)
    fan_in = in_cpj * kernel_size * max(len(nb) for nb in neighbour_list)
    gain = math.sqrt(2.0 / (1.0 + 5.0))           # a = sqrt(5)
    w_bound = gain * math.sqrt(3.0 / fan_in)
    weight = jax.random.uniform(kw, (out_channels, in_channels, kernel_size),
                                jnp.float32, -w_bound, w_bound)
    b_bound = 1.0 / math.sqrt(fan_in)
    bias = jax.random.uniform(kb, (out_channels,), jnp.float32,
                              -b_bound, b_bound)
    return weight, mask, bias


if __name__ == "__main__":
    # Small, module-consistent shapes.
    joint_num = 4
    in_cpj, out_cpj = 4, 8
    in_channels = joint_num * in_cpj      # 16
    out_channels = joint_num * out_cpj    # 32
    kernel_size = 3
    stride = 1
    padding = 1
    batch = 2
    T = 16
    neighbour_list = [[0, 1], [0, 1, 2], [1, 2, 3], [2, 3]]

    key = jax.random.PRNGKey(0)
    k_x, k_p = jax.random.split(key)
    x = jax.random.normal(k_x, (batch, in_channels, T), jnp.float32)
    weight, mask, bias = build_skeleton_conv_params(
        k_p, neighbour_list, in_channels, out_channels, kernel_size, joint_num)

    # TODO(synk): add_offset=False path only; the set_offset/offset_enc branch
    # (stateful SkeletonLinear offset) is not translated.

    out = skeleton_conv_forward(x, weight, mask, bias,
                                stride=stride, padding=padding)
    out = jax.block_until_ready(out)

    # --- Reference checks -----------------------------------------------
    w_masked = weight * mask
    # (1) Tight check: same bf16-quantized operands, f32 accumulation
    #     (identical math to the kernel's MXU path up to summation order).
    xq = x.astype(jnp.bfloat16).astype(jnp.float32)
    wq = w_masked.astype(jnp.bfloat16).astype(jnp.float32)
    ref_q = jax.lax.conv_general_dilated(
        xq, wq, window_strides=(stride,), padding=[(padding, padding)],
        dimension_numbers=("NCH", "OIH", "NCH")) + bias[None, :, None]
    assert out.shape == ref_q.shape
    assert jnp.allclose(out, ref_q, rtol=1e-4, atol=1e-4)

    # (2) Loose check against the full-f32 F.conv1d semantics of the module
    #     (difference is only bf16 operand quantization).
    ref = jax.lax.conv_general_dilated(
        x, w_masked, window_strides=(stride,), padding=[(padding, padding)],
        dimension_numbers=("NCH", "OIH", "NCH")) + bias[None, :, None]
    assert jnp.allclose(out, ref, rtol=5e-2, atol=5e-2)

    print("KERNEL_OK")
</pallas_src>

<mosaic_0001>
module attributes {stable_mosaic.version = 11 : i64} {
  func.func @_skeleton_conv_kernel(%arg0: i32, %arg1: memref<2x16x18xbf16, #tpu.memory_space<vmem>>, %arg2: memref<32x48xbf16, #tpu.memory_space<vmem>>, %arg3: memref<32x1xf32, #tpu.memory_space<vmem>>, %arg4: memref<32x32xf32, #tpu.memory_space<vmem>>) attributes {dimension_semantics = [#tpu.dimension_semantics<parallel>], iteration_bounds = array<i64: 1>, scalar_prefetch = 0 : i64, scratch_operands = 0 : i64, tpu.core_type = #tpu.core_type<tc>, window_params = [{transform_indices = @transform_0, window_bounds = array<i64: 2, 16, 18>}, {pipeline_mode = #tpu.pipeline_mode<synchronous>, transform_indices = @transform_1, window_bounds = array<i64: 32, 48>}, {pipeline_mode = #tpu.pipeline_mode<synchronous>, transform_indices = @transform_2, window_bounds = array<i64: 32, 1>}, {transform_indices = @transform_3, window_bounds = array<i64: 32, 32>}]} {
    %c0 = arith.constant 0 : index
    %c0_0 = arith.constant 0 : index
    %c0_1 = arith.constant 0 : index
    %0 = vector.load %arg1[%c0, %c0_0, %c0_1] : memref<2x16x18xbf16, #tpu.memory_space<vmem>>, vector<1x16x16xbf16>
    %1 = vector.shape_cast %0 : vector<1x16x16xbf16> to vector<16x16xbf16>
    %c0_2 = arith.constant 0 : index
    %c0_3 = arith.constant 0 : index
    %c1 = arith.constant 1 : index
    %2 = vector.load %arg1[%c0_2, %c0_3, %c1] : memref<2x16x18xbf16, #tpu.memory_space<vmem>>, vector<1x16x16xbf16>
    %3 = vector.shape_cast %2 : vector<1x16x16xbf16> to vector<16x16xbf16>
    %c0_4 = arith.constant 0 : index
    %c0_5 = arith.constant 0 : index
    %c2 = arith.constant 2 : index
    %4 = vector.load %arg1[%c0_4, %c0_5, %c2] : memref<2x16x18xbf16, #tpu.memory_space<vmem>>, vector<1x16x16xbf16>
    %5 = vector.shape_cast %4 : vector<1x16x16xbf16> to vector<16x16xbf16>
    %6 = tpu.concatenate %1, %3, %5 in 0 : vector<16x16xbf16>, vector<16x16xbf16>, vector<16x16xbf16> -> vector<48x16xbf16>
    %c1_6 = arith.constant 1 : index
    %c0_7 = arith.constant 0 : index
    %c0_8 = arith.constant 0 : index
    %7 = vector.load %arg1[%c1_6, %c0_7, %c0_8] : memref<2x16x18xbf16, #tpu.memory_space<vmem>>, vector<1x16x16xbf16>
    %8 = vector.shape_cast %7 : vector<1x16x16xbf16> to vector<16x16xbf16>
    %c1_9 = arith.constant 1 : index
    %c0_10 = arith.constant 0 : index
    %c1_11 = arith.constant 1 : index
    %9 = vector.load %arg1[%c1_9, %c0_10, %c1_11] : memref<2x16x18xbf16, #tpu.memory_space<vmem>>, vector<1x16x16xbf16>
    %10 = vector.shape_cast %9 : vector<1x16x16xbf16> to vector<16x16xbf16>
    %c1_12 = arith.constant 1 : index
    %c0_13 = arith.constant 0 : index
    %c2_14 = arith.constant 2 : index
    %11 = vector.load %arg1[%c1_12, %c0_13, %c2_14] : memref<2x16x18xbf16, #tpu.memory_space<vmem>>, vector<1x16x16xbf16>
    %12 = vector.shape_cast %11 : vector<1x16x16xbf16> to vector<16x16xbf16>
    %13 = tpu.concatenate %8, %10, %12 in 0 : vector<16x16xbf16>, vector<16x16xbf16>, vector<16x16xbf16> -> vector<48x16xbf16>
    %14 = tpu.concatenate %6, %13 in 1 : vector<48x16xbf16>, vector<48x16xbf16> -> vector<48x32xbf16>
    %c0_15 = arith.constant 0 : index
    %c0_16 = arith.constant 0 : index
    %15 = vector.load %arg2[%c0_15, %c0_16] : memref<32x48xbf16, #tpu.memory_space<vmem>>, vector<32x48xbf16>
    %cst = arith.constant dense<0.000000e+00> : vector<32x32xf32>
    %16 = tpu.matmul %15, %14, %cst {dimension_numbers = #tpu.dot_dimension_numbers<[1], [0], [0], [1], [0, 0, 1, 1], [], []>} : vector<32x48xbf16>, vector<48x32xbf16>, vector<32x32xf32> -> vector<32x32xf32>
    %c0_17 = arith.constant 0 : index
    %c0_18 = arith.constant 0 : index
    %17 = vector.load %arg3[%c0_17, %c0_18] : memref<32x1xf32, #tpu.memory_space<vmem>>, vector<32x1xf32>
    %18 = vector.broadcast %17 : vector<32x1xf32> to vector<32x32xf32>
    %19 = arith.addf %16, %18 : vector<32x32xf32>
    %c0_19 = arith.constant 0 : index
    %c0_20 = arith.constant 0 : index
    %20 = vector.load %arg4[%c0_19, %c0_20] : memref<32x32xf32, #tpu.memory_space<vmem>>, vector<32x32xf32>
    tpu.vector_store %arg4[%c0_19, %c0_20], %19 {strides = array<i32>} : memref<32x32xf32, #tpu.memory_space<vmem>>, vector<32x32xf32>,
    return
  }
  func.func @transform_0(%arg0: i32) -> (i32, i32, i32) {
    %c0_i32 = arith.constant 0 : i32
    %c0_i32_0 = arith.constant 0 : i32
    %c0_i32_1 = arith.constant 0 : i32
    return %arg0, %c0_i32, %c0_i32_0 : i32, i32, i32
  }
  func.func @transform_1(%arg0: i32) -> (i32, i32) {
    %c0_i32 = arith.constant 0 : i32
    %c0_i32_0 = arith.constant 0 : i32
    %c0_i32_1 = arith.constant 0 : i32
    return %c0_i32, %c0_i32_0 : i32, i32
  }
  func.func @transform_2(%arg0: i32) -> (i32, i32) {
    %c0_i32 = arith.constant 0 : i32
    %c0_i32_0 = arith.constant 0 : i32
    %c0_i32_1 = arith.constant 0 : i32
    return %c0_i32, %c0_i32_0 : i32, i32
  }
  func.func @transform_3(%arg0: i32) -> (i32, i32) {
    %c0_i32 = arith.constant 0 : i32
    %c0_i32_0 = arith.constant 0 : i32
    return %c0_i32, %arg0 : i32, i32
  }
}

</mosaic_0001>

<llo_original>
// kernel: tpu_custom_call.1
$region0: #{tpu_custom_call.1}
  #allocation0 [shape = 'u32[]', space=smem, size = 0x4, offset = 0x4, fixed_abs, tag = 'smem constant byte address 0x4 - core index']
  #allocation1 [shape = 'u32[144,128]{1,0:T(1,128)}', space=vmem, size = 0x12000, scoped, tag = 'internal scratch']
  %s0 = inlined_call_operand.vmem [shape: bf16[2,16,18], index: 0, kind: input, shape index: {}]
  %s1 = inlined_call_operand.vmem [shape: bf16[32,48], index: 1, kind: input, shape index: {}]
  %s2 = inlined_call_operand.vmem [shape: f32[32,1], index: 2, kind: input, shape index: {}]
  %s3 = inlined_call_operand.hbm [shape: f32[32,32], index: 3, kind: output, shape index: {}]
  %s4 = sld [smem:[#allocation0]]
  $region22: #{tpu_custom_call.1} parent=0
    _
  %s6 = ssub.s32 1, %s4
  %s7 = scalar_select 0, %s6, %s4
  $region1: #{tpu_custom_call.1} parent=0
    #allocation2 [shape = 'u8[16384]{0}', space=vmem, size = 0x4000, scoped, tag = 'output window, operand 0, single buffered']
    #allocation3 [shape = 's32[1]{0}', space=sflag, size = 0x4, scoped, tag = 'scoped memory for tpu_custom_call.1']
    %8 = vsyncpa [#allocation3], 0
    // Predicated region
    $region2: #{tpu_custom_call.1} parent=1 // pred_check
      _
    $region3: #{tpu_custom_call.1} parent=1 // pred_check_branch
      %10 = sbr.rel (0) target = $region5
    $region4: #{tpu_custom_call.1} parent=1 // pred_region
      _
    $region5: #{tpu_custom_call.1} parent=1 // pred_fallthru
      _
    // Predicated region
    $region6: #{tpu_custom_call.1} parent=1 // pred_check
      _
    $region7: #{tpu_custom_call.1} parent=1 // pred_check_branch
      %12 = sbr.rel (0) target = $region9
    $region8: #{tpu_custom_call.1} parent=1 // pred_region
      _
    $region9: #{tpu_custom_call.1} parent=1 // pred_fallthru
      _
    // Predicated region
    $region10: #{tpu_custom_call.1} parent=1 // pred_check
      _
    $region11: #{tpu_custom_call.1} parent=1 // pred_check_branch
      %14 = sbr.rel (0) target = $region13
    $region12: #{tpu_custom_call.1} parent=1 // pred_region
      _
    $region13: #{tpu_custom_call.1} parent=1 // pred_fallthru
      _
    %v16 = vld [vmem:[%s0] sm:$0xf]
    %v17 = vld [vmem:[%s0 + $0x4] sm:$0xf]
    %v20 = vunpack.c.l.b16 %v16
    %v21 = vunpack.c.l.b16 %v17
    %v22 = vpack.c.b16 %v21, %v20
    %23 = vrot.lane.b32.xlu0 %v22, 127
    %v24 = vpop.permute.xlu0 %23
    %25 = vrot.lane.b32.xlu0 %v22, 126
    %v26 = vpop.permute.xlu0 %25
    %s27 = scalar_lea.vmem %s0, 8
    %v28 = vld [vmem:[%s27] sm:$0xf]
    %v29 = vld [vmem:[%s27 + $0x4] sm:$0xf]
    %v32 = vunpack.c.l.b16 %v28
    %v33 = vunpack.c.l.b16 %v29
    %v34 = vpack.c.b16 %v33, %v32
    %35 = vrot.lane.b32.xlu0 %v34, 127
    %v36 = vpop.permute.xlu0 %35
    %37 = vrot.lane.b32.xlu0 %v34, 126
    %v38 = vpop.permute.xlu0 %37
    %39 = vrot.lane.b32.xlu0 %v34, 16
    %v40 = vpop.permute.xlu0 %39
    %41 = vrot.lane.b32.xlu0 %v36, 16
    %v42 = vpop.permute.xlu0 %41
    %43 = vrot.lane.b32.xlu0 %v38, 16
    %v44 = vpop.permute.xlu0 %43
    %vm45 = vcmask 130048
    %v48 = vsel %vm45, %v22, %v40
    %v52 = vsel %vm45, %v24, %v42
    %v56 = vsel %vm45, %v26, %v44
    %v58 = vld [vmem:[%s1] sm:$0xf]
    %v59 = vld [vmem:[%s1 + $0x4] sm:$0xf]
    %v60 = vld [vmem:[%s1 + $0x8] sm:$0xf]
    %v61 = vld [vmem:[%s1 + $0xc] sm:$0xf]
    %v62 = vld [vmem:[%s2] sm:$0xff]
    %v63 = vld [vmem:[%s2 + $0x8] sm:$0xff]
    %v64 = vld [vmem:[%s2 + $0x10] sm:$0xff]
    %v65 = vld [vmem:[%s2 + $0x18] sm:$0xff]
    %67 = vset.pattern.permute.xlu0 0
    %68 = vperm.xlu0 %67, %v62
    %v69 = vpop.permute.xlu0 %68
    %72 = vset.pattern.permute.xlu0 0
    %73 = vperm.xlu0 %72, %v63
    %v74 = vpop.permute.xlu0 %73
    %77 = vset.pattern.permute.xlu0 0
    %78 = vperm.xlu0 %77, %v64
    %v79 = vpop.permute.xlu0 %78
    %82 = vset.pattern.permute.xlu0 0
    %83 = vperm.xlu0 %82, %v65
    %v84 = vpop.permute.xlu0 %83
    %v90 = vunpack.c.l.b16 %v58
    %v91 = vunpack.c.l.b16 %v59
    %v92 = vunpack.c.l.b16 %v60
    %v93 = vunpack.c.l.b16 %v61
    %v94 = vpack.c.b16 %v91, %v90
    %v95 = vpack.c.b16 %v93, %v92
    %vm96 = vcmask 392192
    %v98 = vsel %vm96, %v94, 0
    %v101 = vsel %vm96, %v95, 0
    %103 = vmatprep.subr.bf16.mxu0 0
    %104 = vmatpush1.bf16.msra.mxu0 %v48
    %105 = vmatprep.subr.bf16.mxu0 0
    %106 = vmatpush1.bf16.msra.mxu0 %v52
    %107 = vmatprep.subr.bf16.mxu0 0
    %108 = vmatpush1.bf16.msra.mxu0 %v56
    %109 = vmatprep.subr.bf16.mxu0 0
    %110 = vmatpush1.bf16.msra.mxu0 0
    %111 = vmatprep.subr.bf16.mxu0 0
    %112 = vmatpush1.bf16.msra.mxu0 0
    %113 = vmatprep.subr.bf16.mxu0 0
    %114 = vmatpush1.bf16.msra.mxu0 0
    %115 = vmatprep.subr.bf16.mxu0 0
    %116 = vmatpush1.bf16.msra.mxu0 0
    %117 = vmatprep.subr.bf16.mxu0 0
    %118 = vmatpush1.bf16.msra.mxu0 0
    %119 = vmatprep.subr.bf16.mxu0 0
    %120 = vmatpush1.bf16.msra.mxu0 0
    %121 = vmatprep.subr.bf16.mxu0 0
    %122 = vmatpush1.bf16.msra.mxu0 0
    %123 = vmatprep.subr.bf16.mxu0 0
    %124 = vmatpush1.bf16.msra.mxu0 0
    %125 = vmatprep.subr.bf16.mxu0 0
    %126 = vmatpush1.bf16.msra.mxu0 0
    %127 = vmatprep.subr.bf16.mxu0 0
    %128 = vmatpush1.bf16.msra.mxu0 0
    %129 = vmatprep.subr.bf16.mxu0 0
    %130 = vmatpush1.bf16.msra.mxu0 0
    %131 = vmatprep.subr.bf16.mxu0 0
    %132 = vmatpush1.bf16.msra.mxu0 0
    %133 = vmatprep.subr.bf16.mxu0 0
    %134 = vmatpush1.bf16.msra.mxu0 0
    %135 = vmatprep.mubr.bf16.mxu0 0
    %136 = vmatmul.mubr.bf16.gmra.mrb[0].mxu0 %v98
    %v137 = vpop.f32.mrb[0].mxu0
    %v138 = vadd.f32 %v69, %v137
    %v139 = vpop.f32.mrb[0].mxu0
    %v140 = vpop.f32.mrb[0].mxu0
    %v141 = vadd.f32 %v74, %v140
    %v142 = vpop.f32.mrb[0].mxu0
    %143 = vmatprep.mubr.bf16.mxu0 0
    %144 = vmatmul.mubr.bf16.gmra.mrb[0].mxu0 %v101
    %v145 = vpop.f32.mrb[0].mxu0
    %v146 = vadd.f32 %v79, %v145
    %v147 = vpop.f32.mrb[0].mxu0
    %v148 = vpop.f32.mrb[0].mxu0
    %v149 = vadd.f32 %v84, %v148
    %v150 = vpop.f32.mrb[0].mxu0
    %151 = vdwg.mxu0
    %vm152 = vcmask 261120
    %153 = vst.msk [vmem:[#allocation2] sm:$0xff] %vm152, %v138
    %154 = vst.msk [vmem:[#allocation2 + $0x8] sm:$0xff] %vm152, %v141
    %155 = vst.msk [vmem:[#allocation2 + $0x10] sm:$0xff] %vm152, %v146
    %156 = vst.msk [vmem:[#allocation2 + $0x18] sm:$0xff] %vm152, %v149
    // Predicated region
    $region14: #{tpu_custom_call.1} parent=1 // pred_check
      _
    $region15: #{tpu_custom_call.1} parent=1 // pred_check_branch
      %158 = sbr.rel (0) target = $region17
    $region16: #{tpu_custom_call.1} parent=1 // pred_region
      %s160 = ssub.s32 512, 512
      %161 = vsyncadd [#allocation3], %s160
      %s162 = sshll.u32 [#allocation2], 4
      %s163 = int_to_ptr.vmem [resolvable:$true] %s162
      %168 = dma.vmem_to_hbm [thread:$0]  %s163, 512, %s3, [#allocation3], 128, 128, 8
    $region17: #{tpu_custom_call.1} parent=1 // pred_fallthru
      _
    // Predicated region
    $region18: #{tpu_custom_call.1} parent=1 // pred_check
      _
    $region19: #{tpu_custom_call.1} parent=1 // pred_check_branch
      %170 = sbr.rel (0) target = $region21
    $region20: #{tpu_custom_call.1} parent=1 // pred_region
      %171 = dma.done [#allocation3], 512
    $region21: #{tpu_custom_call.1} parent=1 // pred_fallthru
      _
    %172 = vsyncpa [#allocation3], 1

</llo_original>
